<compile_context>
chip_gen: v6e
topology: v6e:2x2x1
jax: 0.10.0
libtpu: 0.0.40
codegen_flags: <defaults>
</compile_context>

<pallas_src>
import functools

import jax
import jax.numpy as jnp
from jax.experimental import pallas as pl
from jax.experimental.pallas import tpu as pltpu


def _fused_forward_kernel(
    lstm_ref, head_ref, y_ref, *, emb, hidden, o_layer, batch, seq_len
):
    f32 = jnp.float32
    H = hidden
    B = batch
    IN = emb + o_layer
    G = 4 * H

    # ---- unpack recurrence parameters (all lane-width 4H, one DMA) ----------
    wx_emb_t = lstm_ref[0:emb, :]              # (emb, 4H): wx cols hit by E@Y_0
    wh_t = lstm_ref[IN:IN + H, :]              # (H, 4H)
    tail = lstm_ref[IN + H:IN + H + 8, :]      # aligned 8-row tail block
    b_row = tail[0:1, :]                       # (1, 4H) bias
    e_row = tail[1:2, 0:emb]                   # (1, emb) = E[:, 141]

    # ---- hoisted constant input-gate contribution ----------------------------
    # X_1 = cat(E @ Y_0, O_0): Y_0 is a one-hot at row 141 so E @ Y_0 is column
    # E[:, 141] broadcast over the batch, and O_0 == 0, so only the first `emb`
    # rows of wx^T contribute and every batch row of (wx @ X_1 + b) is equal.
    gx = jnp.dot(e_row, wx_emb_t, preferred_element_type=f32) + b_row   # (1, 4H)
    gates_x = jnp.broadcast_to(gx, (B, G))     # hoisted out of the loop

    # ---- recurrence -----------------------------------------------------------
    # TODO(synk): `paper_LSTM_Module` is undefined in the source; modeled as a
    # standard stateful LSTM cell driven by the (never-updated) X_1.
    def step(_, carry):
        h, c = carry                                                    # (B, H)
        gates = gates_x + jnp.dot(h, wh_t, preferred_element_type=f32)  # (B, 4H)
        sig = jax.nn.sigmoid(gates)            # full-width: 1 vreg per EUP pass
        tah = jnp.tanh(gates)
        i_g = sig[:, 0:H]
        f_g = sig[:, H:2 * H]
        g_g = tah[:, 2 * H:3 * H]
        o_g = sig[:, 3 * H:4 * H]
        c_n = f_g * c + i_g * g_g
        h_n = o_g * jnp.tanh(c_n)
        return h_n, c_n

    h0 = jnp.zeros((B, H), f32)
    c0 = jnp.zeros((B, H), f32)
    h_t, _ = jax.lax.fori_loop(0, seq_len, step, (h0, c0),
                               unroll=seq_len <= 16)

    # ---- output head (once; intermediate Y_distr is never consumed) ----------
    # O_w @ [H_t; ones(v_length)] == O_w[:, :H] @ H_t + rowsum(O_w[:, H:]);
    # the ones-block contribution was folded into `obias` in the wrapper.
    # TODO(synk): if the real module feeds an attention context / cell state
    # instead of the literal ones(v_length) block, this folded bias (and the
    # single head evaluation) must be revisited.
    owh_t = head_ref[0:H, 0:o_layer]                     # (H, o_layer)
    obias = head_ref[H:H + 1, 0:o_layer]                 # (1, o_layer)
    wout_t = head_ref[H + 8:H + 8 + o_layer, :]          # (o_layer, vocab)

    o_t = jnp.tanh(
        jnp.dot(h_t, owh_t, preferred_element_type=f32) + obias)   # (B, o_layer)
    logits = jnp.dot(o_t, wout_t, preferred_element_type=f32)      # (B, vocab)

    # torch nn.Softmax(0): O_t is batch-major in the reference, so the logits
    # tensor is (batch, vocab) and dim 0 is the BATCH axis -> normalize over
    # batch (faithful to the reference, however unusual).
    m = jnp.max(logits, axis=0, keepdims=True)
    e = jnp.exp(logits - m)
    denom = jnp.sum(e, axis=0, keepdims=True)
    y_ref[...] = e / denom                     # exact divide (review note)


@functools.partial(
    jax.jit,
    static_argnames=(
        "embedding_size", "hidden_size", "batch_size", "sequence_length",
        "vocab_size", "o_layer_size", "v_length",
    ),
)
def encoder_decoder_forward(
    x_batch, E, wx, wh, b, o_w, wout, *, embedding_size, hidden_size,
    batch_size, sequence_length, vocab_size, o_layer_size, v_length,
):
    # TODO(synk): CNN() and AttentionMechanism() are not defined in the source;
    # V = CNN(X_batch) and the attention module are never consumed in the
    # forward as written, so they are skipped rather than faked.
    del x_batch

    f32 = jnp.float32
    H = hidden_size
    IN = embedding_size + o_layer_size
    G = 4 * H
    assert o_w.shape == (o_layer_size, v_length + hidden_size)
    assert vocab_size >= o_layer_size and vocab_size > 141

    # ----- pack 1: recurrence params, lane-width 4H (one DMA descriptor) ------
    wx_t = wx.astype(f32).T                                     # (IN, 4H)
    wh_t = wh.astype(f32).T                                     # (H, 4H)
    tail = jnp.zeros((8, G), f32)                               # 8-row aligned tail
    tail = tail.at[0, :].set(b.astype(f32).reshape(-1))         # bias row
    tail = tail.at[1, :embedding_size].set(E[:, 141].astype(f32))  # E @ Y_0 col
    lstm_pack = jnp.concatenate([wx_t, wh_t, tail], axis=0)     # (IN+H+8, 4H)

    # ----- pack 2: output head, lane-width vocab (one DMA descriptor) ---------
    # O(concat(H_t, ones)) => O_w[:, :H] @ H_t + rowsum(O_w[:, H:]) folded bias.
    owh_blk = jnp.zeros((H, vocab_size), f32).at[:, :o_layer_size].set(
        o_w[:, :H].astype(f32).T)
    obias_blk = jnp.zeros((8, vocab_size), f32).at[0, :o_layer_size].set(
        jnp.sum(o_w[:, H:].astype(f32), axis=1))
    wout_t = wout.astype(f32).T                                 # (o_layer, vocab)
    head_pack = jnp.concatenate([owh_blk, obias_blk, wout_t], axis=0)

    # Advisory cost so XLA can overlap the tiny custom call with neighbors.
    flops = (
        2 * embedding_size * G
        + sequence_length * 2 * batch_size * H * G
        + 2 * batch_size * H * o_layer_size
        + 2 * batch_size * o_layer_size * vocab_size
    )
    transcendentals = (
        sequence_length * batch_size * (2 * G + H)
        + batch_size * o_layer_size
        + batch_size * vocab_size
    )
    bytes_accessed = 4 * (
        lstm_pack.size + head_pack.size + batch_size * vocab_size)

    kernel = functools.partial(
        _fused_forward_kernel,
        emb=embedding_size, hidden=H, o_layer=o_layer_size,
        batch=batch_size, seq_len=sequence_length,
    )
    y = pl.pallas_call(
        kernel,
        out_shape=jax.ShapeDtypeStruct((batch_size, vocab_size), f32),
        in_specs=[pl.BlockSpec(memory_space=pltpu.MemorySpace.VMEM)] * 2,
        out_specs=pl.BlockSpec(memory_space=pltpu.MemorySpace.VMEM),
        cost_estimate=pl.CostEstimate(
            flops=flops, transcendentals=transcendentals,
            bytes_accessed=bytes_accessed),
    )(lstm_pack, head_pack)

    # The torch forward returns the literal 0; return the last Y_distr so the
    # computed values are observable.  Shape (batch, vocab), row-major.
    return y


def _reference_forward(E, wx, wh, b, o_w, wout, *, hidden_size, batch_size,
                       sequence_length, vocab_size, o_layer_size, v_length):
    """Pure-jnp mirror of the torch forward (same LSTM-cell modeling)."""
    f32 = jnp.float32
    H = hidden_size
    B = batch_size
    Y0 = jnp.zeros((vocab_size, B), f32).at[141, :].set(1.0)
    O0 = jnp.zeros((o_layer_size, B), f32)
    X1 = jnp.concatenate([E @ Y0, O0], axis=0)               # (IN, B)
    h = jnp.zeros((H, B), f32)
    c = jnp.zeros((H, B), f32)
    for _ in range(sequence_length):
        gates = wx @ X1 + wh @ h + b
        i_g = jax.nn.sigmoid(gates[0:H])
        f_g = jax.nn.sigmoid(gates[H:2 * H])
        g_g = jnp.tanh(gates[2 * H:3 * H])
        o_g = jax.nn.sigmoid(gates[3 * H:4 * H])
        c = f_g * c + i_g * g_g
        h = o_g * jnp.tanh(c)
    C_t = jnp.ones((v_length, B), f32)
    concat = jnp.concatenate([h, C_t], axis=0).T              # (B, H + v_length)
    O_t = jnp.tanh(concat @ o_w.T)                            # (B, o_layer)
    logits = O_t @ wout.T                                     # (B, vocab)
    return jax.nn.softmax(logits, axis=0)                     # Softmax(0) = batch


if __name__ == "__main__":
    embedding_size = 32
    hidden_size = 32
    batch_size = 4
    sequence_length = 3
    vocab_size = 256        # must exceed 141 (Y_0[141, :] = 1)
    o_layer_size = 32
    v_length = 512
    input_size = embedding_size + o_layer_size

    key = jax.random.PRNGKey(0)
    keys = jax.random.split(key, 7)
    # Deterministic synthetic parameters (torch __init__ gives the shapes; E is
    # random instead of the literal zeros so the kernel computes non-trivial
    # values).
    E = 0.02 * jax.random.normal(keys[0], (embedding_size, vocab_size), jnp.float32)
    wx = 0.10 * jax.random.normal(keys[1], (4 * hidden_size, input_size), jnp.float32)
    wh = 0.10 * jax.random.normal(keys[2], (4 * hidden_size, hidden_size), jnp.float32)
    b = 0.10 * jax.random.normal(keys[3], (4 * hidden_size, 1), jnp.float32)
    o_w = 0.05 * jax.random.normal(keys[4], (o_layer_size, v_length + hidden_size), jnp.float32)
    wout = 0.05 * jax.random.normal(keys[5], (vocab_size, o_layer_size), jnp.float32)

    # NCHW conv-style input, as in PyTorch (consumed only by the undefined CNN).
    x_batch = jax.random.normal(keys[6], (batch_size, 3, 16, 16), jnp.float32)

    y = encoder_decoder_forward(
        x_batch, E, wx, wh, b, o_w, wout,
        embedding_size=embedding_size, hidden_size=hidden_size,
        batch_size=batch_size, sequence_length=sequence_length,
        vocab_size=vocab_size, o_layer_size=o_layer_size, v_length=v_length,
    )
    y = jax.block_until_ready(y)

    assert y.shape == (batch_size, vocab_size)
    # nn.Softmax(0) over the (batch, vocab) logits => every vocab column sums to 1.
    assert bool(jnp.allclose(jnp.sum(y, axis=0), jnp.ones((vocab_size,)), atol=1e-4))
    assert bool(jnp.all(jnp.isfinite(y)))

    y_expected = _reference_forward(
        E, wx, wh, b, o_w, wout,
        hidden_size=hidden_size, batch_size=batch_size,
        sequence_length=sequence_length, vocab_size=vocab_size,
        o_layer_size=o_layer_size, v_length=v_length,
    )
    assert bool(jnp.allclose(y, y_expected, atol=2e-5, rtol=2e-4))

    print("KERNEL_OK")
</pallas_src>

<mosaic_0001>
module attributes {stable_mosaic.version = 11 : i64} {
  func.func @_fused_forward_kernel(%arg0: memref<104x128xf32, #tpu.memory_space<vmem>>, %arg1: memref<72x256xf32, #tpu.memory_space<vmem>>, %arg2: memref<4x256xf32, #tpu.memory_space<vmem>>) attributes {dimension_semantics = [], scalar_prefetch = 0 : i64, scratch_operands = 0 : i64, tpu.core_type = #tpu.core_type<tc>} {
    %c0 = arith.constant 0 : index
    %c0_0 = arith.constant 0 : index
    %0 = vector.load %arg0[%c0, %c0_0] : memref<104x128xf32, #tpu.memory_space<vmem>>, vector<32x128xf32>
    %c64 = arith.constant 64 : index
    %c0_1 = arith.constant 0 : index
    %1 = vector.load %arg0[%c64, %c0_1] : memref<104x128xf32, #tpu.memory_space<vmem>>, vector<32x128xf32>
    %c96 = arith.constant 96 : index
    %c0_2 = arith.constant 0 : index
    %2 = vector.load %arg0[%c96, %c0_2] : memref<104x128xf32, #tpu.memory_space<vmem>>, vector<8x128xf32>
    %3 = vector.extract_strided_slice %2 {offsets = [0, 0], sizes = [1, 128], strides = [1, 1]} : vector<8x128xf32> to vector<1x128xf32>
    %4 = vector.extract_strided_slice %2 {offsets = [1, 0], sizes = [1, 32], strides = [1, 1]} : vector<8x128xf32> to vector<1x32xf32>
    %cst = arith.constant dense<0.000000e+00> : vector<1x128xf32>
    %5 = tpu.matmul %4, %0, %cst {dimension_numbers = #tpu.dot_dimension_numbers<[1], [0], [0], [1], [0, 0, 1, 1], [], []>} : vector<1x32xf32>, vector<32x128xf32>, vector<1x128xf32> -> vector<1x128xf32>
    %6 = arith.addf %5, %3 : vector<1x128xf32>
    %7 = vector.shape_cast %6 : vector<1x128xf32> to vector<1x128xf32>
    %8 = vector.broadcast %7 : vector<1x128xf32> to vector<4x128xf32>
    %cst_3 = arith.constant 0.000000e+00 : f32
    %9 = vector.broadcast %cst_3 : f32 to vector<4x32xf32>
    %cst_4 = arith.constant 0.000000e+00 : f32
    %10 = vector.broadcast %cst_4 : f32 to vector<4x32xf32>
    %c0_i32 = arith.constant 0 : i32
    %cst_5 = arith.constant dense<0.000000e+00> : vector<4x128xf32>
    %11 = tpu.matmul %9, %1, %cst_5 {dimension_numbers = #tpu.dot_dimension_numbers<[1], [0], [0], [1], [0, 0, 1, 1], [], []>} : vector<4x32xf32>, vector<32x128xf32>, vector<4x128xf32> -> vector<4x128xf32>
    %12 = arith.addf %8, %11 : vector<4x128xf32>
    %13 = arith.negf %12 : vector<4x128xf32>
    %14 = math.exp %13 : vector<4x128xf32>
    %cst_6 = arith.constant 1.000000e+00 : f32
    %15 = vector.broadcast %cst_6 : f32 to vector<4x128xf32>
    %16 = arith.addf %15, %14 : vector<4x128xf32>
    %17 = arith.divf %15, %16 : vector<4x128xf32>
    %18 = math.tanh %12 : vector<4x128xf32>
    %19 = vector.extract_strided_slice %17 {offsets = [0, 0], sizes = [4, 32], strides = [1, 1]} : vector<4x128xf32> to vector<4x32xf32>
    %20 = vector.extract_strided_slice %17 {offsets = [0, 32], sizes = [4, 32], strides = [1, 1]} : vector<4x128xf32> to vector<4x32xf32>
    %21 = vector.extract_strided_slice %18 {offsets = [0, 64], sizes = [4, 32], strides = [1, 1]} : vector<4x128xf32> to vector<4x32xf32>
    %22 = vector.extract_strided_slice %17 {offsets = [0, 96], sizes = [4, 32], strides = [1, 1]} : vector<4x128xf32> to vector<4x32xf32>
    %23 = arith.mulf %20, %10 : vector<4x32xf32>
    %24 = arith.mulf %19, %21 : vector<4x32xf32>
    %25 = arith.addf %23, %24 : vector<4x32xf32>
    %26 = math.tanh %25 : vector<4x32xf32>
    %27 = arith.mulf %22, %26 : vector<4x32xf32>
    %c1_i32 = arith.constant 1 : i32
    %cst_7 = arith.constant dense<0.000000e+00> : vector<4x128xf32>
    %28 = tpu.matmul %27, %1, %cst_7 {dimension_numbers = #tpu.dot_dimension_numbers<[1], [0], [0], [1], [0, 0, 1, 1], [], []>} : vector<4x32xf32>, vector<32x128xf32>, vector<4x128xf32> -> vector<4x128xf32>
    %29 = arith.addf %8, %28 : vector<4x128xf32>
    %30 = arith.negf %29 : vector<4x128xf32>
    %31 = math.exp %30 : vector<4x128xf32>
    %cst_8 = arith.constant 1.000000e+00 : f32
    %32 = vector.broadcast %cst_8 : f32 to vector<4x128xf32>
    %33 = arith.addf %32, %31 : vector<4x128xf32>
    %34 = arith.divf %32, %33 : vector<4x128xf32>
    %35 = math.tanh %29 : vector<4x128xf32>
    %36 = vector.extract_strided_slice %34 {offsets = [0, 0], sizes = [4, 32], strides = [1, 1]} : vector<4x128xf32> to vector<4x32xf32>
    %37 = vector.extract_strided_slice %34 {offsets = [0, 32], sizes = [4, 32], strides = [1, 1]} : vector<4x128xf32> to vector<4x32xf32>
    %38 = vector.extract_strided_slice %35 {offsets = [0, 64], sizes = [4, 32], strides = [1, 1]} : vector<4x128xf32> to vector<4x32xf32>
    %39 = vector.extract_strided_slice %34 {offsets = [0, 96], sizes = [4, 32], strides = [1, 1]} : vector<4x128xf32> to vector<4x32xf32>
    %40 = arith.mulf %37, %25 : vector<4x32xf32>
    %41 = arith.mulf %36, %38 : vector<4x32xf32>
    %42 = arith.addf %40, %41 : vector<4x32xf32>
    %43 = math.tanh %42 : vector<4x32xf32>
    %44 = arith.mulf %39, %43 : vector<4x32xf32>
    %c2_i32 = arith.constant 2 : i32
    %cst_9 = arith.constant dense<0.000000e+00> : vector<4x128xf32>
    %45 = tpu.matmul %44, %1, %cst_9 {dimension_numbers = #tpu.dot_dimension_numbers<[1], [0], [0], [1], [0, 0, 1, 1], [], []>} : vector<4x32xf32>, vector<32x128xf32>, vector<4x128xf32> -> vector<4x128xf32>
    %46 = arith.addf %8, %45 : vector<4x128xf32>
    %47 = arith.negf %46 : vector<4x128xf32>
    %48 = math.exp %47 : vector<4x128xf32>
    %cst_10 = arith.constant 1.000000e+00 : f32
    %49 = vector.broadcast %cst_10 : f32 to vector<4x128xf32>
    %50 = arith.addf %49, %48 : vector<4x128xf32>
    %51 = arith.divf %49, %50 : vector<4x128xf32>
    %52 = math.tanh %46 : vector<4x128xf32>
    %53 = vector.extract_strided_slice %51 {offsets = [0, 0], sizes = [4, 32], strides = [1, 1]} : vector<4x128xf32> to vector<4x32xf32>
    %54 = vector.extract_strided_slice %51 {offsets = [0, 32], sizes = [4, 32], strides = [1, 1]} : vector<4x128xf32> to vector<4x32xf32>
    %55 = vector.extract_strided_slice %52 {offsets = [0, 64], sizes = [4, 32], strides = [1, 1]} : vector<4x128xf32> to vector<4x32xf32>
    %56 = vector.extract_strided_slice %51 {offsets = [0, 96], sizes = [4, 32], strides = [1, 1]} : vector<4x128xf32> to vector<4x32xf32>
    %57 = arith.mulf %54, %42 : vector<4x32xf32>
    %58 = arith.mulf %53, %55 : vector<4x32xf32>
    %59 = arith.addf %57, %58 : vector<4x32xf32>
    %60 = math.tanh %59 : vector<4x32xf32>
    %61 = arith.mulf %56, %60 : vector<4x32xf32>
    %c0_11 = arith.constant 0 : index
    %c0_12 = arith.constant 0 : index
    %62 = vector.load %arg1[%c0_11, %c0_12] : memref<72x256xf32, #tpu.memory_space<vmem>>, vector<32x32xf32>
    %c32 = arith.constant 32 : index
    %c0_13 = arith.constant 0 : index
    %63 = vector.load %arg1[%c32, %c0_13] : memref<72x256xf32, #tpu.memory_space<vmem>>, vector<1x32xf32>
    %c40 = arith.constant 40 : index
    %c0_14 = arith.constant 0 : index
    %64 = vector.load %arg1[%c40, %c0_14] : memref<72x256xf32, #tpu.memory_space<vmem>>, vector<32x256xf32>
    %cst_15 = arith.constant dense<0.000000e+00> : vector<4x32xf32>
    %65 = tpu.matmul %61, %62, %cst_15 {dimension_numbers = #tpu.dot_dimension_numbers<[1], [0], [0], [1], [0, 0, 1, 1], [], []>} : vector<4x32xf32>, vector<32x32xf32>, vector<4x32xf32> -> vector<4x32xf32>
    %66 = vector.broadcast %63 : vector<1x32xf32> to vector<4x32xf32>
    %67 = arith.addf %65, %66 : vector<4x32xf32>
    %68 = math.tanh %67 : vector<4x32xf32>
    %cst_16 = arith.constant dense<0.000000e+00> : vector<4x256xf32>
    %69 = tpu.matmul %68, %64, %cst_16 {dimension_numbers = #tpu.dot_dimension_numbers<[1], [0], [0], [1], [0, 0, 1, 1], [], []>} : vector<4x32xf32>, vector<32x256xf32>, vector<4x256xf32> -> vector<4x256xf32>
    %cst_17 = arith.constant dense<0xFF800000> : vector<256xf32>
    %70 = vector.multi_reduction <maximumf>, %69, %cst_17 [0] : vector<4x256xf32> to vector<256xf32>
    %71 = vector.shape_cast %70 : vector<256xf32> to vector<1x256xf32>
    %72 = vector.broadcast %71 : vector<1x256xf32> to vector<4x256xf32>
    %73 = arith.subf %69, %72 : vector<4x256xf32>
    %74 = math.exp %73 : vector<4x256xf32>
    %cst_18 = arith.constant dense<0.000000e+00> : vector<256xf32>
    %75 = vector.multi_reduction <add>, %74, %cst_18 [0] : vector<4x256xf32> to vector<256xf32>
    %76 = vector.shape_cast %75 : vector<256xf32> to vector<1x256xf32>
    %77 = vector.broadcast %76 : vector<1x256xf32> to vector<4x256xf32>
    %78 = arith.divf %74, %77 : vector<4x256xf32>
    %c0_19 = arith.constant 0 : index
    %c0_20 = arith.constant 0 : index
    %79 = vector.load %arg2[%c0_19, %c0_20] : memref<4x256xf32, #tpu.memory_space<vmem>>, vector<4x256xf32>
    tpu.vector_store %arg2[%c0_19, %c0_20], %78 {strides = array<i32>} : memref<4x256xf32, #tpu.memory_space<vmem>>, vector<4x256xf32>,
    return
  }
}

</mosaic_0001>

<llo_original>
// kernel: encoder_decoder_forward.1
$region0: #{encoder_decoder_forward.1}
  #allocation0 [shape = 'u32[]', space=smem, size = 0x4, offset = 0x4, fixed_abs, tag = 'smem constant byte address 0x4 - core index']
  #allocation1 [shape = 'u32[144,128]{1,0:T(1,128)}', space=vmem, size = 0x12000, scoped, tag = 'internal scratch']
  %s0 = inlined_call_operand.vmem [shape: f32[104,128], index: 0, kind: input, shape index: {}]
  %s1 = inlined_call_operand.vmem [shape: f32[72,256], index: 1, kind: input, shape index: {}]
  %s2 = inlined_call_operand.hbm [shape: f32[4,256], index: 2, kind: output, shape index: {}]
  %s3 = sld [smem:[#allocation0]]
  $region18: #{encoder_decoder_forward.1} parent=0
    _
  %s5 = ssub.s32 1, %s3
  %s6 = scalar_select 0, %s5, %s3
  $region1: #{encoder_decoder_forward.1} parent=0
    #allocation2 [shape = 'u8[4096]{0}', space=vmem, size = 0x1000, scoped, tag = 'output window, operand 0, single buffered']
    #allocation3 [shape = 's32[1]{0}', space=sflag, size = 0x4, scoped, tag = 'scoped memory for encoder_decoder_forward.1']
    %7 = vsyncpa [#allocation3], 0
    // Predicated region
    $region2: #{encoder_decoder_forward.1} parent=1 // pred_check
      _
    $region3: #{encoder_decoder_forward.1} parent=1 // pred_check_branch
      %9 = sbr.rel (0) target = $region5
    $region4: #{encoder_decoder_forward.1} parent=1 // pred_region
      _
    $region5: #{encoder_decoder_forward.1} parent=1 // pred_fallthru
      _
    // Predicated region
    $region6: #{encoder_decoder_forward.1} parent=1 // pred_check
      _
    $region7: #{encoder_decoder_forward.1} parent=1 // pred_check_branch
      %11 = sbr.rel (0) target = $region9
    $region8: #{encoder_decoder_forward.1} parent=1 // pred_region
      _
    $region9: #{encoder_decoder_forward.1} parent=1 // pred_fallthru
      _
    %v12 = vld [vmem:[%s0] sm:$0xff]
    %v13 = vld [vmem:[%s0 + $0x8] sm:$0xff]
    %v14 = vld [vmem:[%s0 + $0x10] sm:$0xff]
    %v15 = vld [vmem:[%s0 + $0x18] sm:$0xff]
    %v16 = vld [vmem:[%s0 + $0x40] sm:$0xff]
    %v17 = vld [vmem:[%s0 + $0x48] sm:$0xff]
    %v18 = vld [vmem:[%s0 + $0x50] sm:$0xff]
    %v19 = vld [vmem:[%s0 + $0x58] sm:$0xff]
    %v20 = vld [vmem:[%s0 + $0x60] sm:$0xff]
    %v22 = vrot.slane %v20, 1
    %vm23 = vcmask 261120
    %v24 = vsel %vm23, %v22, 0
    %26 = vmatprep.subr.mxu0 0.0
    %27 = vmatpush1.msra.mxu0 0.0
    %28 = vmatprep.subr.mxu0 0.0
    %29 = vmatpush1.msra.mxu0 0.0
    %30 = vmatprep.subr.mxu0 0.0
    %31 = vmatpush1.msra.mxu0 0.0
    %32 = vmatprep.subr.mxu0 0.0
    %33 = vmatpush1.msra.mxu0 0.0
    %34 = vmatprep.subr.mxu0 0.0
    %35 = vmatpush1.msra.mxu0 0.0
    %36 = vmatprep.subr.mxu0 0.0
    %37 = vmatpush1.msra.mxu0 0.0
    %38 = vmatprep.subr.mxu0 0.0
    %39 = vmatpush1.msra.mxu0 0.0
    %40 = vmatprep.subr.mxu0 0.0
    %41 = vmatpush1.msra.mxu0 0.0
    %42 = vmatprep.subr.mxu0 0.0
    %43 = vmatpush1.msra.mxu0 0.0
    %44 = vmatprep.subr.mxu0 0.0
    %45 = vmatpush1.msra.mxu0 0.0
    %46 = vmatprep.subr.mxu0 0.0
    %47 = vmatpush1.msra.mxu0 0.0
    %48 = vmatprep.subr.mxu0 0.0
    %49 = vmatpush1.msra.mxu0 0.0
    %50 = vmatprep.subr.mxu0 0.0
    %51 = vmatpush1.msra.mxu0 %v15
    %52 = vmatprep.subr.mxu0 0.0
    %53 = vmatpush1.msra.mxu0 %v14
    %54 = vmatprep.subr.mxu0 0.0
    %55 = vmatpush1.msra.mxu0 %v13
    %56 = vmatprep.subr.mxu0 0.0
    %57 = vmatpush1.msra.mxu0 %v12
    %58 = vmatprep.subr.mxu0 0.0
    %59 = vmatpush2.msra.mxu0 0.0
    %60 = vmatprep.subr.mxu0 0.0
    %61 = vmatpush2.msra.mxu0 0.0
    %62 = vmatprep.subr.mxu0 0.0
    %63 = vmatpush2.msra.mxu0 0.0
    %64 = vmatprep.subr.mxu0 0.0
    %65 = vmatpush2.msra.mxu0 0.0
    %66 = vmatprep.subr.mxu0 0.0
    %67 = vmatpush2.msra.mxu0 0.0
    %68 = vmatprep.subr.mxu0 0.0
    %69 = vmatpush2.msra.mxu0 0.0
    %70 = vmatprep.subr.mxu0 0.0
    %71 = vmatpush2.msra.mxu0 0.0
    %72 = vmatprep.subr.mxu0 0.0
    %73 = vmatpush2.msra.mxu0 0.0
    %74 = vmatprep.subr.mxu0 0.0
    %75 = vmatpush2.msra.mxu0 0.0
    %76 = vmatprep.subr.mxu0 0.0
    %77 = vmatpush2.msra.mxu0 0.0
    %78 = vmatprep.subr.mxu0 0.0
    %79 = vmatpush2.msra.mxu0 0.0
    %80 = vmatprep.subr.mxu0 0.0
    %81 = vmatpush2.msra.mxu0 0.0
    %82 = vmatprep.subr.mxu0 0.0
    %83 = vmatpush2.msra.mxu0 0.0
    %84 = vmatprep.subr.mxu0 0.0
    %85 = vmatpush2.msra.mxu0 0.0
    %86 = vmatprep.subr.mxu0 0.0
    %87 = vmatpush2.msra.mxu0 0.0
    %88 = vmatprep.subr.mxu0 0.0
    %89 = vmatpush2.msra.mxu0 0.0
    %90 = vmatprep.mubr.f32.mxu0 0.0
    %91 = vmatmul.mubr.f32.gmra.mxu0 %v24
    %v92 = vpop.f32.mrf.mxu0
    %v93 = vadd.f32 %v20, %v92
    %v94 = vpop.f32.mrf.mxu0
    %95 = vdwg.mxu0
    %v96 = vlaneseq
    %v97 = vshrl.u32 %v96, 7
    %v98 = vsub.s32 0, %v97
    %v99 = vrot.slane %v93, %v98
    %v101 = vsel %vm23, 0.0, 0
    %103 = vmatprep.subr.mxu0 0.0
    %104 = vmatpush1.msra.mxu0 0.0
    %105 = vmatprep.subr.mxu0 0.0
    %106 = vmatpush1.msra.mxu0 0.0
    %107 = vmatprep.subr.mxu0 0.0
    %108 = vmatpush1.msra.mxu0 0.0
    %109 = vmatprep.subr.mxu0 0.0
    %110 = vmatpush1.msra.mxu0 0.0
    %111 = vmatprep.subr.mxu0 0.0
    %112 = vmatpush1.msra.mxu0 0.0
    %113 = vmatprep.subr.mxu0 0.0
    %114 = vmatpush1.msra.mxu0 0.0
    %115 = vmatprep.subr.mxu0 0.0
    %116 = vmatpush1.msra.mxu0 0.0
    %117 = vmatprep.subr.mxu0 0.0
    %118 = vmatpush1.msra.mxu0 0.0
    %119 = vmatprep.subr.mxu0 0.0
    %120 = vmatpush1.msra.mxu0 0.0
    %121 = vmatprep.subr.mxu0 0.0
    %122 = vmatpush1.msra.mxu0 0.0
    %123 = vmatprep.subr.mxu0 0.0
    %124 = vmatpush1.msra.mxu0 0.0
    %125 = vmatprep.subr.mxu0 0.0
    %126 = vmatpush1.msra.mxu0 0.0
    %127 = vmatprep.subr.mxu0 0.0
    %128 = vmatpush1.msra.mxu0 %v19
    %129 = vmatprep.subr.mxu0 0.0
    %130 = vmatpush1.msra.mxu0 %v18
    %131 = vmatprep.subr.mxu0 0.0
    %132 = vmatpush1.msra.mxu0 %v17
    %133 = vmatprep.subr.mxu0 0.0
    %134 = vmatpush1.msra.mxu0 %v16
    %135 = vmatprep.subr.mxu0 0.0
    %136 = vmatpush2.msra.mxu0 0.0
    %137 = vmatprep.subr.mxu0 0.0
    %138 = vmatpush2.msra.mxu0 0.0
    %139 = vmatprep.subr.mxu0 0.0
    %140 = vmatpush2.msra.mxu0 0.0
    %141 = vmatprep.subr.mxu0 0.0
    %142 = vmatpush2.msra.mxu0 0.0
    %143 = vmatprep.subr.mxu0 0.0
    %144 = vmatpush2.msra.mxu0 0.0
    %145 = vmatprep.subr.mxu0 0.0
    %146 = vmatpush2.msra.mxu0 0.0
    %147 = vmatprep.subr.mxu0 0.0
    %148 = vmatpush2.msra.mxu0 0.0
    %149 = vmatprep.subr.mxu0 0.0
    %150 = vmatpush2.msra.mxu0 0.0
    %151 = vmatprep.subr.mxu0 0.0
    %152 = vmatpush2.msra.mxu0 0.0
    %153 = vmatprep.subr.mxu0 0.0
    %154 = vmatpush2.msra.mxu0 0.0
    %155 = vmatprep.subr.mxu0 0.0
    %156 = vmatpush2.msra.mxu0 0.0
    %157 = vmatprep.subr.mxu0 0.0
    %158 = vmatpush2.msra.mxu0 0.0
    %159 = vmatprep.subr.mxu0 0.0
    %160 = vmatpush2.msra.mxu0 0.0
    %161 = vmatprep.subr.mxu0 0.0
    %162 = vmatpush2.msra.mxu0 0.0
    %163 = vmatprep.subr.mxu0 0.0
    %164 = vmatpush2.msra.mxu0 0.0
    %165 = vmatprep.subr.mxu0 0.0
    %166 = vmatpush2.msra.mxu0 0.0
    %167 = vmatprep.mubr.f32.mxu0 0.0
    %168 = vmatmul.mubr.f32.gmra.mxu0 %v101
    %v169 = vpop.f32.mrf.mxu0
    %v170 = vadd.f32 0.0, %v169
    %v171 = vpop.f32.mrf.mxu0
    %172 = vdwg.mxu0
    %v173 = vadd.f32 %v99, %v170
    %v174 = vxor.u32 %v173, 2147483648
    %v175 = vmul.f32 %v174, 1.442695
    %v176 = vpow.pop %v175
    %v177 = vadd.f32 %v176, 1.0
    %v178 = vrcp.pop %v177
    %v179 = vmul.f32 1.0, %v178
    %v180 = vtanh.pop %v173
    %v181 = vmul.f32 %v179, 0.0
    %183 = vrot.lane.b32.xlu0 %v180, 64
    %v184 = vpop.permute.xlu0 %183
    %v186 = vmul.f32 %v179, %v184
    %188 = vrot.lane.b32.xlu0 %v186, 32
    %v189 = vpop.permute.xlu0 %188
    %v191 = vadd.f32 %v181, %v189
    %v192 = vtanh.pop %v191
    %194 = vrot.lane.b32.xlu0 %v192, 64
    %v195 = vpop.permute.xlu0 %194
    %v197 = vmul.f32 %v179, %v195
    %199 = vrot.lane.b32.xlu0 %v197, 32
    %v200 = vpop.permute.xlu0 %199
    %v201 = vsel %vm23, %v200, 0
    %203 = vmatprep.subr.mxu0 0.0
    %204 = vmatpush1.msra.mxu0 0.0
    %205 = vmatprep.subr.mxu0 0.0
    %206 = vmatpush1.msra.mxu0 0.0
    %207 = vmatprep.subr.mxu0 0.0
    %208 = vmatpush1.msra.mxu0 0.0
    %209 = vmatprep.subr.mxu0 0.0
    %210 = vmatpush1.msra.mxu0 0.0
    %211 = vmatprep.subr.mxu0 0.0
    %212 = vmatpush1.msra.mxu0 0.0
    %213 = vmatprep.subr.mxu0 0.0
    %214 = vmatpush1.msra.mxu0 0.0
    %215 = vmatprep.subr.mxu0 0.0
    %216 = vmatpush1.msra.mxu0 0.0
    %217 = vmatprep.subr.mxu0 0.0
    %218 = vmatpush1.msra.mxu0 0.0
    %219 = vmatprep.subr.mxu0 0.0
    %220 = vmatpush1.msra.mxu0 0.0
    %221 = vmatprep.subr.mxu0 0.0
    %222 = vmatpush1.msra.mxu0 0.0
    %223 = vmatprep.subr.mxu0 0.0
    %224 = vmatpush1.msra.mxu0 0.0
    %225 = vmatprep.subr.mxu0 0.0
    %226 = vmatpush1.msra.mxu0 0.0
    %227 = vmatprep.subr.mxu0 0.0
    %228 = vmatpush1.msra.mxu0 %v19
    %229 = vmatprep.subr.mxu0 0.0
    %230 = vmatpush1.msra.mxu0 %v18
    %231 = vmatprep.subr.mxu0 0.0
    %232 = vmatpush1.msra.mxu0 %v17
    %233 = vmatprep.subr.mxu0 0.0
    %234 = vmatpush1.msra.mxu0 %v16
    %235 = vmatprep.subr.mxu0 0.0
    %236 = vmatpush2.msra.mxu0 0.0
    %237 = vmatprep.subr.mxu0 0.0
    %238 = vmatpush2.msra.mxu0 0.0
    %239 = vmatprep.subr.mxu0 0.0
    %240 = vmatpush2.msra.mxu0 0.0
    %241 = vmatprep.subr.mxu0 0.0
    %242 = vmatpush2.msra.mxu0 0.0
    %243 = vmatprep.subr.mxu0 0.0
    %244 = vmatpush2.msra.mxu0 0.0
    %245 = vmatprep.subr.mxu0 0.0
    %246 = vmatpush2.msra.mxu0 0.0
    %247 = vmatprep.subr.mxu0 0.0
    %248 = vmatpush2.msra.mxu0 0.0
    %249 = vmatprep.subr.mxu0 0.0
    %250 = vmatpush2.msra.mxu0 0.0
    %251 = vmatprep.subr.mxu0 0.0
    %252 = vmatpush2.msra.mxu0 0.0
    %253 = vmatprep.subr.mxu0 0.0
    %254 = vmatpush2.msra.mxu0 0.0
    %255 = vmatprep.subr.mxu0 0.0
    %256 = vmatpush2.msra.mxu0 0.0
    %257 = vmatprep.subr.mxu0 0.0
    %258 = vmatpush2.msra.mxu0 0.0
    %259 = vmatprep.subr.mxu0 0.0
    %260 = vmatpush2.msra.mxu0 0.0
    %261 = vmatprep.subr.mxu0 0.0
    %262 = vmatpush2.msra.mxu0 0.0
    %263 = vmatprep.subr.mxu0 0.0
    %264 = vmatpush2.msra.mxu0 0.0
    %265 = vmatprep.subr.mxu0 0.0
    %266 = vmatpush2.msra.mxu0 0.0
    %267 = vmatprep.mubr.f32.mxu0 0.0
    %268 = vmatmul.mubr.f32.gmra.mxu0 %v201
    %v269 = vpop.f32.mrf.mxu0
    %v270 = vadd.f32 0.0, %v269
    %v271 = vpop.f32.mrf.mxu0
    %272 = vdwg.mxu0
    %v273 = vadd.f32 %v99, %v270
    %v274 = vxor.u32 %v273, 2147483648
    %v275 = vmul.f32 %v274, 1.442695
    %v276 = vpow.pop %v275
    %v277 = vadd.f32 %v276, 1.0
    %v278 = vrcp.pop %v277
    %v279 = vmul.f32 1.0, %v278
    %v280 = vtanh.pop %v273
    %v281 = vmul.f32 %v279, %v191
    %283 = vrot.lane.b32.xlu0 %v280, 64
    %v284 = vpop.permute.xlu0 %283
    %v286 = vmul.f32 %v279, %v284
    %288 = vrot.lane.b32.xlu0 %v286, 32
    %v289 = vpop.permute.xlu0 %288
    %v291 = vadd.f32 %v281, %v289
    %v292 = vtanh.pop %v291
    %294 = vrot.lane.b32.xlu0 %v292, 64
    %v295 = vpop.permute.xlu0 %294
    %v297 = vmul.f32 %v279, %v295
    %299 = vrot.lane.b32.xlu0 %v297, 32
    %v300 = vpop.permute.xlu0 %299
    %v301 = vsel %vm23, %v300, 0
    %303 = vmatprep.subr.mxu0 0.0
    %304 = vmatpush1.msra.mxu0 0.0
    %305 = vmatprep.subr.mxu0 0.0
    %306 = vmatpush1.msra.mxu0 0.0
    %307 = vmatprep.subr.mxu0 0.0
    %308 = vmatpush1.msra.mxu0 0.0
    %309 = vmatprep.subr.mxu0 0.0
    %310 = vmatpush1.msra.mxu0 0.0
    %311 = vmatprep.subr.mxu0 0.0
    %312 = vmatpush1.msra.mxu0 0.0
    %313 = vmatprep.subr.mxu0 0.0
    %314 = vmatpush1.msra.mxu0 0.0
    %315 = vmatprep.subr.mxu0 0.0
    %316 = vmatpush1.msra.mxu0 0.0
    %317 = vmatprep.subr.mxu0 0.0
    %318 = vmatpush1.msra.mxu0 0.0
    %319 = vmatprep.subr.mxu0 0.0
    %320 = vmatpush1.msra.mxu0 0.0
    %321 = vmatprep.subr.mxu0 0.0
    %322 = vmatpush1.msra.mxu0 0.0
    %323 = vmatprep.subr.mxu0 0.0
    %324 = vmatpush1.msra.mxu0 0.0
    %325 = vmatprep.subr.mxu0 0.0
    %326 = vmatpush1.msra.mxu0 0.0
    %327 = vmatprep.subr.mxu0 0.0
    %328 = vmatpush1.msra.mxu0 %v19
    %329 = vmatprep.subr.mxu0 0.0
    %330 = vmatpush1.msra.mxu0 %v18
    %331 = vmatprep.subr.mxu0 0.0
    %332 = vmatpush1.msra.mxu0 %v17
    %333 = vmatprep.subr.mxu0 0.0
    %334 = vmatpush1.msra.mxu0 %v16
    %335 = vmatprep.subr.mxu0 0.0
    %336 = vmatpush2.msra.mxu0 0.0
    %337 = vmatprep.subr.mxu0 0.0
    %338 = vmatpush2.msra.mxu0 0.0
    %339 = vmatprep.subr.mxu0 0.0
    %340 = vmatpush2.msra.mxu0 0.0
    %341 = vmatprep.subr.mxu0 0.0
    %342 = vmatpush2.msra.mxu0 0.0
    %343 = vmatprep.subr.mxu0 0.0
    %344 = vmatpush2.msra.mxu0 0.0
    %345 = vmatprep.subr.mxu0 0.0
    %346 = vmatpush2.msra.mxu0 0.0
    %347 = vmatprep.subr.mxu0 0.0
    %348 = vmatpush2.msra.mxu0 0.0
    %349 = vmatprep.subr.mxu0 0.0
    %350 = vmatpush2.msra.mxu0 0.0
    %351 = vmatprep.subr.mxu0 0.0
    %352 = vmatpush2.msra.mxu0 0.0
    %353 = vmatprep.subr.mxu0 0.0
    %354 = vmatpush2.msra.mxu0 0.0
    %355 = vmatprep.subr.mxu0 0.0
    %356 = vmatpush2.msra.mxu0 0.0
    %357 = vmatprep.subr.mxu0 0.0
    %358 = vmatpush2.msra.mxu0 0.0
    %359 = vmatprep.subr.mxu0 0.0
    %360 = vmatpush2.msra.mxu0 0.0
    %361 = vmatprep.subr.mxu0 0.0
    %362 = vmatpush2.msra.mxu0 0.0
    %363 = vmatprep.subr.mxu0 0.0
    %364 = vmatpush2.msra.mxu0 0.0
    %365 = vmatprep.subr.mxu0 0.0
    %366 = vmatpush2.msra.mxu0 0.0
    %367 = vmatprep.mubr.f32.mxu0 0.0
    %368 = vmatmul.mubr.f32.gmra.mxu0 %v301
    %v369 = vpop.f32.mrf.mxu0
    %v370 = vadd.f32 0.0, %v369
    %v371 = vpop.f32.mrf.mxu0
    %372 = vdwg.mxu0
    %v373 = vadd.f32 %v99, %v370
    %v374 = vxor.u32 %v373, 2147483648
    %v375 = vmul.f32 %v374, 1.442695
    %v376 = vpow.pop %v375
    %v377 = vadd.f32 %v376, 1.0
    %v378 = vrcp.pop %v377
    %v379 = vmul.f32 1.0, %v378
    %v380 = vtanh.pop %v373
    %v381 = vmul.f32 %v379, %v291
    %383 = vrot.lane.b32.xlu0 %v380, 64
    %v384 = vpop.permute.xlu0 %383
    %v386 = vmul.f32 %v379, %v384
    %388 = vrot.lane.b32.xlu0 %v386, 32
    %v389 = vpop.permute.xlu0 %388
    %v391 = vadd.f32 %v381, %v389
    %v392 = vtanh.pop %v391
    %394 = vrot.lane.b32.xlu0 %v392, 64
    %v395 = vpop.permute.xlu0 %394
    %v397 = vmul.f32 %v379, %v395
    %v398 = vld [vmem:[%s1] sm:$0xff]
    %v399 = vld [vmem:[%s1 + $0x10] sm:$0xff]
    %v400 = vld [vmem:[%s1 + $0x20] sm:$0xff]
    %v401 = vld [vmem:[%s1 + $0x30] sm:$0xff]
    %v402 = vld [vmem:[%s1 + $0x40] ss:$0 sm:$0xff]
    %v403 = vld [vmem:[%s1 + $0x50] sm:$0xff]
    %v404 = vld [vmem:[%s1 + $0x58] sm:$0xff]
    %v405 = vld [vmem:[%s1 + $0x60] sm:$0xff]
    %v406 = vld [vmem:[%s1 + $0x68] sm:$0xff]
    %v407 = vld [vmem:[%s1 + $0x70] sm:$0xff]
    %v408 = vld [vmem:[%s1 + $0x78] sm:$0xff]
    %v409 = vld [vmem:[%s1 + $0x80] sm:$0xff]
    %v410 = vld [vmem:[%s1 + $0x88] sm:$0xff]
    %412 = vrot.lane.b32.xlu0 %v397, 32
    %v413 = vpop.permute.xlu0 %412
    %v414 = vsel %vm23, %v413, 0
    %416 = vmatprep.subr.mxu0 0.0
    %417 = vmatpush1.msra.mxu0 0.0
    %418 = vmatprep.subr.mxu0 0.0
    %419 = vmatpush1.msra.mxu0 0.0
    %420 = vmatprep.subr.mxu0 0.0
    %421 = vmatpush1.msra.mxu0 0.0
    %422 = vmatprep.subr.mxu0 0.0
    %423 = vmatpush1.msra.mxu0 0.0
    %424 = vmatprep.subr.mxu0 0.0
    %425 = vmatpush1.msra.mxu0 0.0
    %426 = vmatprep.subr.mxu0 0.0
    %427 = vmatpush1.msra.mxu0 0.0
    %428 = vmatprep.subr.mxu0 0.0
    %429 = vmatpush1.msra.mxu0 0.0
    %430 = vmatprep.subr.mxu0 0.0
    %431 = vmatpush1.msra.mxu0 0.0
    %432 = vmatprep.subr.mxu0 0.0
    %433 = vmatpush1.msra.mxu0 0.0
    %434 = vmatprep.subr.mxu0 0.0
    %435 = vmatpush1.msra.mxu0 0.0
    %436 = vmatprep.subr.mxu0 0.0
    %437 = vmatpush1.msra.mxu0 0.0
    %438 = vmatprep.subr.mxu0 0.0
    %439 = vmatpush1.msra.mxu0 0.0
    %440 = vmatprep.subr.mxu0 0.0
    %441 = vmatpush1.msra.mxu0 %v401
    %442 = vmatprep.subr.mxu0 0.0
    %443 = vmatpush1.msra.mxu0 %v400
    %444 = vmatprep.subr.mxu0 0.0
    %445 = vmatpush1.msra.mxu0 %v399
    %446 = vmatprep.subr.mxu0 0.0
    %447 = vmatpush1.msra.mxu0 %v398
    %448 = vmatprep.subr.mxu0 0.0
    %449 = vmatpush2.msra.mxu0 0.0
    %450 = vmatprep.subr.mxu0 0.0
    %451 = vmatpush2.msra.mxu0 0.0
    %452 = vmatprep.subr.mxu0 0.0
    %453 = vmatpush2.msra.mxu0 0.0
    %454 = vmatprep.subr.mxu0 0.0
    %455 = vmatpush2.msra.mxu0 0.0
    %456 = vmatprep.subr.mxu0 0.0
    %457 = vmatpush2.msra.mxu0 0.0
    %458 = vmatprep.subr.mxu0 0.0
    %459 = vmatpush2.msra.mxu0 0.0
    %460 = vmatprep.subr.mxu0 0.0
    %461 = vmatpush2.msra.mxu0 0.0
    %462 = vmatprep.subr.mxu0 0.0
    %463 = vmatpush2.msra.mxu0 0.0
    %464 = vmatprep.subr.mxu0 0.0
    %465 = vmatpush2.msra.mxu0 0.0
    %466 = vmatprep.subr.mxu0 0.0
    %467 = vmatpush2.msra.mxu0 0.0
    %468 = vmatprep.subr.mxu0 0.0
    %469 = vmatpush2.msra.mxu0 0.0
    %470 = vmatprep.subr.mxu0 0.0
    %471 = vmatpush2.msra.mxu0 0.0
    %472 = vmatprep.subr.mxu0 0.0
    %473 = vmatpush2.msra.mxu0 0.0
    %474 = vmatprep.subr.mxu0 0.0
    %475 = vmatpush2.msra.mxu0 0.0
    %476 = vmatprep.subr.mxu0 0.0
    %477 = vmatpush2.msra.mxu0 0.0
    %478 = vmatprep.subr.mxu0 0.0
    %479 = vmatpush2.msra.mxu0 0.0
    %480 = vmatprep.mubr.f32.mxu0 0.0
    %481 = vmatmul.mubr.f32.gmra.mxu0 %v414
    %v482 = vpop.f32.mrf.mxu0
    %v483 = vadd.f32 %v402, %v482
    %v484 = vpop.f32.mrf.mxu0
    %485 = vdwg.mxu0
    %v486 = vtanh.pop %v483
    %v488 = vsel %vm23, %v486, 0
    %490 = vmatprep.subr.mxu0 0.0
    %491 = vmatpush1.msra.mxu0 0.0
    %492 = vmatprep.subr.mxu0 0.0
    %493 = vmatpush1.msra.mxu0 0.0
    %494 = vmatprep.subr.mxu0 0.0
    %495 = vmatpush1.msra.mxu0 0.0
    %496 = vmatprep.subr.mxu0 0.0
    %497 = vmatpush1.msra.mxu0 0.0
    %498 = vmatprep.subr.mxu0 0.0
    %499 = vmatpush1.msra.mxu0 0.0
    %500 = vmatprep.subr.mxu0 0.0
    %501 = vmatpush1.msra.mxu0 0.0
    %502 = vmatprep.subr.mxu0 0.0
    %503 = vmatpush1.msra.mxu0 0.0
    %504 = vmatprep.subr.mxu0 0.0
    %505 = vmatpush1.msra.mxu0 0.0
    %506 = vmatprep.subr.mxu0 0.0
    %507 = vmatpush1.msra.mxu0 0.0
    %508 = vmatprep.subr.mxu0 0.0
    %509 = vmatpush1.msra.mxu0 0.0
    %510 = vmatprep.subr.mxu0 0.0
    %511 = vmatpush1.msra.mxu0 0.0
    %512 = vmatprep.subr.mxu0 0.0
    %513 = vmatpush1.msra.mxu0 0.0
    %514 = vmatprep.subr.mxu0 %v410
    %515 = vmatpush1.msra.mxu0 %v409
    %516 = vmatprep.subr.mxu0 %v408
    %517 = vmatpush1.msra.mxu0 %v407
    %518 = vmatprep.subr.mxu0 %v406
    %519 = vmatpush1.msra.mxu0 %v405
    %520 = vmatprep.subr.mxu0 %v404
    %521 = vmatpush1.msra.mxu0 %v403
    %522 = vmatprep.subr.mxu0 0.0
    %523 = vmatpush2.msra.mxu0 0.0
    %524 = vmatprep.subr.mxu0 0.0
    %525 = vmatpush2.msra.mxu0 0.0
    %526 = vmatprep.subr.mxu0 0.0
    %527 = vmatpush2.msra.mxu0 0.0
    %528 = vmatprep.subr.mxu0 0.0
    %529 = vmatpush2.msra.mxu0 0.0
    %530 = vmatprep.subr.mxu0 0.0
    %531 = vmatpush2.msra.mxu0 0.0
    %532 = vmatprep.subr.mxu0 0.0
    %533 = vmatpush2.msra.mxu0 0.0
    %534 = vmatprep.subr.mxu0 0.0
    %535 = vmatpush2.msra.mxu0 0.0
    %536 = vmatprep.subr.mxu0 0.0
    %537 = vmatpush2.msra.mxu0 0.0
    %538 = vmatprep.subr.mxu0 0.0
    %539 = vmatpush2.msra.mxu0 0.0
    %540 = vmatprep.subr.mxu0 0.0
    %541 = vmatpush2.msra.mxu0 0.0
    %542 = vmatprep.subr.mxu0 0.0
    %543 = vmatpush2.msra.mxu0 0.0
    %544 = vmatprep.subr.mxu0 0.0
    %545 = vmatpush2.msra.mxu0 0.0
    %546 = vmatprep.subr.mxu0 0.0
    %547 = vmatpush2.msra.mxu0 0.0
    %548 = vmatprep.subr.mxu0 0.0
    %549 = vmatpush2.msra.mxu0 0.0
    %550 = vmatprep.subr.mxu0 0.0
    %551 = vmatpush2.msra.mxu0 0.0
    %552 = vmatprep.subr.mxu0 0.0
    %553 = vmatpush2.msra.mxu0 0.0
    %554 = vmatprep.mubr.f32.mxu0 0.0
    %555 = vmatmul.mubr.f32.gmra.mxu0 %v488
    %v556 = vpop.f32.mrf.mxu0
    %v557 = vadd.f32 0.0, %v556
    %v558 = vpop.f32.mrf.mxu0
    %v559 = vadd.f32 0.0, %v558
    %560 = vdwg.mxu0
    %vm561 = vcmask 1043456
    %v562 = vsel %vm561, %v557, -inf
    %v563 = vrot.slane %v562, 4
    %v564 = vmax.f32 %v562, %v563
    %v565 = vrot.slane %v564, 2
    %v566 = vmax.f32 %v564, %v565
    %v567 = vrot.slane %v566, 1
    %v568 = vmax.f32 %v566, %v567
    %v569 = vsel %vm561, %v559, -inf
    %v570 = vrot.slane %v569, 4
    %v571 = vmax.f32 %v569, %v570
    %v572 = vrot.slane %v571, 2
    %v573 = vmax.f32 %v571, %v572
    %v574 = vrot.slane %v573, 1
    %v575 = vmax.f32 %v573, %v574
    %v576 = vsub.f32 %v557, %v568
    %v577 = vsub.f32 %v559, %v575
    %v578 = vmul.f32 %v576, 1.442695
    %v579 = vpow.pop %v578
    %v580 = vmul.f32 %v577, 1.442695
    %v581 = vpow.pop %v580
    %v582 = vsel %vm561, %v579, 0.0
    %v583 = vrot.slane %v582, 4
    %v584 = vadd.f32 %v582, %v583
    %v585 = vrot.slane %v584, 2
    %v586 = vadd.f32 %v584, %v585
    %v587 = vrot.slane %v586, 1
    %v588 = vadd.f32 %v586, %v587
    %v589 = vsel %vm561, %v581, 0.0
    %v590 = vrot.slane %v589, 4
    %v591 = vadd.f32 %v589, %v590
    %v592 = vrot.slane %v591, 2
    %v593 = vadd.f32 %v591, %v592
    %v594 = vrot.slane %v593, 1
    %v595 = vadd.f32 %v593, %v594
    %v596 = vrcp.pop %v588
    %v597 = vmul.f32 %v579, %v596
    %v598 = vrcp.pop %v595
    %v599 = vmul.f32 %v581, %v598
    %v602 = vcombine.low %v597, %v599
    %604 = vst [vmem:[#allocation2] sm:$0xff] %v602
    // Predicated region
    $region10: #{encoder_decoder_forward.1} parent=1 // pred_check
      _
    $region11: #{encoder_decoder_forward.1} parent=1 // pred_check_branch
      %606 = sbr.rel (0) target = $region13
    $region12: #{encoder_decoder_forward.1} parent=1 // pred_region
      %s608 = ssub.s32 128, 128
      %609 = vsyncadd [#allocation3], %s608
      %s611 = sshll.u32 [#allocation2], 4
      %s612 = int_to_ptr.vmem [resolvable:$true] %s611
      %614 = dma.vmem_to_hbm [thread:$0]  %s612, 128, %s2, [#allocation3]
    $region13: #{encoder_decoder_forward.1} parent=1 // pred_fallthru
      _
    // Predicated region
    $region14: #{encoder_decoder_forward.1} parent=1 // pred_check
      _
    $region15: #{encoder_decoder_forward.1} parent=1 // pred_check_branch
      %616 = sbr.rel (0) target = $region17
    $region16: #{encoder_decoder_forward.1} parent=1 // pred_region
      %617 = dma.done [#allocation3], 128
    $region17: #{encoder_decoder_forward.1} parent=1 // pred_fallthru
      _
    %618 = vsyncpa [#allocation3], 1

</llo_original>
